<compile_context>
chip_gen: v7x
topology: tpu7x:2x2x1
jax: 0.10.0
libtpu: 0.0.40
codegen_flags: <defaults>
</compile_context>

<pallas_src>
import jax
import jax.numpy as jnp
from jax.experimental import pallas as pl
from jax.experimental.pallas import tpu as pltpu


def _round_up(x, m):
    return ((x + m - 1) // m) * m


def _cdiv(a, b):
    return (a + b - 1) // b


def _vmem_capacity_bytes():
    """Per-core VMEM capacity (128 MiB v5e/v6e, 64 MiB v7x); conservative fallback."""
    try:
        cap = int(pltpu.get_tpu_info().vmem_capacity_bytes)
        if cap > 0:
            return cap
    except Exception:
        pass
    return 64 * 1024 * 1024  # v7x-safe fallback


def _choose_tiles(M, E, H, xb, wb, budget):
    """Pick (tm, tn, tk): tile H first, then K, shrink tm last (floor 256)."""
    ob = 4  # f32 output / accumulator

    def need(tm, tn, tk, with_acc):
        n = (2 * tm * tk * xb        # x tile, double-buffered
             + 2 * tk * tn * wb      # weight tile, double-buffered
             + 2 * tn * 4            # bias tile
             + 2 * tm * tn * ob)     # out tile, double-buffered
        if with_acc:
            n += tm * tn * 4         # f32 accumulator scratch
        return n

    # Row tile: large (pipeline/MXU friendly); multiple of 8, 1024 cap.
    tm = 1024 if M >= 1024 else _round_up(M, 8)
    tn = H   # full hidden dim (block last dim == full dim is always legal)
    tk = E   # full contraction dim

    # 1) Resident weight too big -> tile H in 256-aligned column blocks
    #    (keep tm large; never collapse it to 8).
    while need(tm, tn, tk, False) > budget and tn > 256:
        tn = max(256, _round_up(_cdiv(tn, 2), 256))

    # 2) Still too big (huge E) -> tile the contraction axis.  tk must divide E
    #    exactly (ragged K tiles would pollute the accumulator), so pick the
    #    largest 128-multiple divisor that fits the budget.
    if need(tm, tn, tk, False) > budget and E % 128 == 0:
        best = None
        d = 128
        while d < E:
            if E % d == 0 and need(tm, tn, d, True) <= budget:
                best = d
            d += 128
        if best is not None:
            tk = best
    # TODO(synk): mask ragged K tiles in-kernel to allow arbitrary tk for huge,
    # non-128-multiple emb_dim.

    # 3) Last resort: shrink tm, floored at 256 (not 8) to keep MXU utilization.
    while need(tm, tn, tk, tk < E) > budget and tm > 256:
        tm = max(256, _round_up(_cdiv(tm, 2), 256))

    return tm, tn, tk


def _linear_kernel_direct(x_ref, w_ref, b_ref, o_ref):
    # Single K step: dot + bias + store, no scratch.
    acc = jnp.dot(x_ref[...], w_ref[...], preferred_element_type=jnp.float32)
    o_ref[...] = (acc + b_ref[...].astype(jnp.float32)).astype(o_ref.dtype)


def _linear_kernel_acc(x_ref, w_ref, b_ref, o_ref, acc_ref):
    # K-tiled path: f32 VMEM accumulator, init at k==0, bias-add + store at k==last.
    k = pl.program_id(2)

    @pl.when(k == 0)
    def _():
        acc_ref[...] = jnp.zeros_like(acc_ref)

    acc_ref[...] += jnp.dot(x_ref[...], w_ref[...],
                            preferred_element_type=jnp.float32)

    @pl.when(k == pl.num_programs(2) - 1)
    def _():
        o_ref[...] = (acc_ref[...] + b_ref[...].astype(jnp.float32)
                      ).astype(o_ref.dtype)


def linear_encoder_forward(vfeat, weight, bias, *, use_bf16=True,
                           tile_m=None, tile_n=None, tile_k=None,
                           vmem_budget_bytes=None):
    """vfeat: (B, S, E), weight: (E, H), bias: (H,) -> (B, S, H) (vfeat.dtype)."""
    B, S, E = vfeat.shape
    H = weight.shape[-1]
    assert weight.shape == (E, H) and bias.shape == (H,)
    M = B * S

    out_dtype = vfeat.dtype
    cdtype = jnp.bfloat16 if use_bf16 else vfeat.dtype

    # Flatten (free reshape); bf16 cast (f32-accumulate happens in the kernel).
    # In a real model the activation cast fuses with the upstream producer.
    x2d = vfeat.reshape(M, E).astype(cdtype)
    w2d = weight.astype(cdtype)
    b2d = bias.reshape(1, H).astype(jnp.float32)

    xb = jnp.dtype(cdtype).itemsize
    wb = xb
    ob = jnp.dtype(out_dtype).itemsize

    cap = _vmem_capacity_bytes()
    budget = int(vmem_budget_bytes) if vmem_budget_bytes is not None else int(cap * 0.7)

    tm, tn, tk = _choose_tiles(M, E, H, xb, wb, budget)

    # Guarantee >= 2 parallel grid steps so megacore / v7x 2-TC sharding has work.
    if _cdiv(M, tm) * _cdiv(H, tn) < 2 and tm > 8:
        tm = max(8, _round_up(_cdiv(tm, 2), 8))

    # Optional explicit overrides (testing / tuning).
    if tile_m is not None:
        tm = int(tile_m)
    if tile_n is not None:
        tn = int(tile_n)
    if tile_k is not None:
        tk = int(tile_k)
    if tk < E and E % tk != 0:
        raise ValueError("tile_k must divide emb_dim (ragged K tiles unsupported)")

    nm, nn, nk = _cdiv(M, tm), _cdiv(H, tn), _cdiv(E, tk)
    grid = (nm, nn, nk)

    in_specs = [
        pl.BlockSpec((tm, tk), lambda i, j, k: (i, k)),   # x row/col tile (pipelined)
        pl.BlockSpec((tk, tn), lambda i, j, k: (k, j)),   # weight tile (resident if untiled)
        pl.BlockSpec((1, tn), lambda i, j, k: (0, j)),    # bias tile
    ]
    out_spec = pl.BlockSpec((tm, tn), lambda i, j, k: (i, j))

    if nk == 1:
        kernel = _linear_kernel_direct
        scratch = []
    else:
        kernel = _linear_kernel_acc
        scratch = [pltpu.VMEM((tm, tn), jnp.float32)]

    cost = pl.CostEstimate(
        flops=2 * M * E * H,
        transcendentals=0,
        bytes_accessed=int(M * E * xb + E * H * wb + M * H * ob + H * 4),
    )

    vmem_limit = int(min(cap, max(budget + (8 << 20), 32 << 20)))

    out2d = pl.pallas_call(
        kernel,
        out_shape=jax.ShapeDtypeStruct((M, H), out_dtype),
        grid_spec=pltpu.PrefetchScalarGridSpec(
            num_scalar_prefetch=0,
            grid=grid,
            in_specs=in_specs,
            out_specs=out_spec,
            scratch_shapes=scratch,
        ),
        compiler_params=pltpu.CompilerParams(
            dimension_semantics=("parallel", "parallel", "arbitrary"),
            vmem_limit_bytes=vmem_limit,
        ),
        cost_estimate=cost,
    )(x2d, w2d, b2d)

    return out2d.reshape(B, S, H)


if __name__ == "__main__":
    key = jax.random.PRNGKey(0)

    # --- Case 1: small shapes consistent with the module (B=2, S=8, E=32, H=32) ---
    B, S, EMB, HID = 2, 8, 32, 32
    k_x, k_m, k_w, k_b = jax.random.split(key, 4)
    vfeat = jax.random.normal(k_x, (B, S, EMB), dtype=jnp.float32)
    vamsk = (jax.random.uniform(k_m, (B, S)) > 0.2).astype(jnp.float32)  # unused by forward
    weight = jax.random.normal(k_w, (EMB, HID), dtype=jnp.float32) / jnp.sqrt(EMB)
    bias = jax.random.normal(k_b, (HID,), dtype=jnp.float32) * 0.01

    ref = vfeat @ weight + bias

    out_bf16 = linear_encoder_forward(vfeat, weight, bias)              # default: bf16 compute
    jax.block_until_ready(out_bf16)
    assert out_bf16.shape == (B, S, HID)
    assert jnp.allclose(out_bf16, ref, atol=3e-2, rtol=3e-2)

    out_f32 = linear_encoder_forward(vfeat, weight, bias, use_bf16=False)  # exact f32 mode
    jax.block_until_ready(out_f32)
    assert jnp.allclose(out_f32, ref, atol=1e-5, rtol=1e-5)

    # --- Case 2: force M/H/K tiling to exercise the accumulator (pl.when) path ---
    E2, H2 = 256, 384
    k_x2, k_w2, k_b2 = jax.random.split(jax.random.PRNGKey(1), 3)
    vfeat2 = jax.random.normal(k_x2, (B, S, E2), dtype=jnp.float32)
    weight2 = jax.random.normal(k_w2, (E2, H2), dtype=jnp.float32) / jnp.sqrt(E2)
    bias2 = jax.random.normal(k_b2, (H2,), dtype=jnp.float32) * 0.01
    ref2 = vfeat2 @ weight2 + bias2

    out2 = linear_encoder_forward(vfeat2, weight2, bias2, use_bf16=False,
                                  tile_m=8, tile_n=128, tile_k=128)
    jax.block_until_ready(out2)
    assert out2.shape == (B, S, H2)
    assert jnp.allclose(out2, ref2, atol=1e-4, rtol=1e-4)

    print("KERNEL_OK")
</pallas_src>

<mosaic_0001>
module attributes {stable_mosaic.version = 11 : i64} {
  func.func @_linear_kernel_direct(%arg0: i32, %arg1: i32, %arg2: i32, %arg3: memref<8x32xbf16, #tpu.memory_space<vmem>>, %arg4: memref<32x32xbf16, #tpu.memory_space<vmem>>, %arg5: memref<1x32xf32, #tpu.memory_space<vmem>>, %arg6: memref<8x32xf32, #tpu.memory_space<vmem>>) attributes {dimension_semantics = [#tpu.dimension_semantics<parallel>, #tpu.dimension_semantics<parallel>, #tpu.dimension_semantics<arbitrary>], iteration_bounds = array<i64: 2, 1, 1>, scalar_prefetch = 0 : i64, scratch_operands = 0 : i64, tpu.core_type = #tpu.core_type<tc>, window_params = [{transform_indices = @transform_0, window_bounds = array<i64: 8, 32>}, {transform_indices = @transform_1, window_bounds = array<i64: 32, 32>}, {transform_indices = @transform_2, window_bounds = array<i64: 1, 32>}, {transform_indices = @transform_3, window_bounds = array<i64: 8, 32>}]} {
    %c0 = arith.constant 0 : index
    %c0_0 = arith.constant 0 : index
    %0 = vector.load %arg3[%c0, %c0_0] : memref<8x32xbf16, #tpu.memory_space<vmem>>, vector<8x32xbf16>
    %c0_1 = arith.constant 0 : index
    %c0_2 = arith.constant 0 : index
    %1 = vector.load %arg4[%c0_1, %c0_2] : memref<32x32xbf16, #tpu.memory_space<vmem>>, vector<32x32xbf16>
    %cst = arith.constant dense<0.000000e+00> : vector<8x32xf32>
    %2 = tpu.matmul %0, %1, %cst {dimension_numbers = #tpu.dot_dimension_numbers<[1], [0], [0], [1], [0, 0, 1, 1], [], []>} : vector<8x32xbf16>, vector<32x32xbf16>, vector<8x32xf32> -> vector<8x32xf32>
    %c0_3 = arith.constant 0 : index
    %c0_4 = arith.constant 0 : index
    %3 = vector.load %arg5[%c0_3, %c0_4] : memref<1x32xf32, #tpu.memory_space<vmem>>, vector<1x32xf32>
    %4 = vector.broadcast %3 : vector<1x32xf32> to vector<8x32xf32>
    %5 = arith.addf %2, %4 : vector<8x32xf32>
    %c0_5 = arith.constant 0 : index
    %c0_6 = arith.constant 0 : index
    %6 = vector.load %arg6[%c0_5, %c0_6] : memref<8x32xf32, #tpu.memory_space<vmem>>, vector<8x32xf32>
    tpu.vector_store %arg6[%c0_5, %c0_6], %5 {strides = array<i32>} : memref<8x32xf32, #tpu.memory_space<vmem>>, vector<8x32xf32>,
    return
  }
  func.func @transform_0(%arg0: i32, %arg1: i32, %arg2: i32) -> (i32, i32) {
    %c0_i32 = arith.constant 0 : i32
    return %arg0, %arg2 : i32, i32
  }
  func.func @transform_1(%arg0: i32, %arg1: i32, %arg2: i32) -> (i32, i32) {
    %c0_i32 = arith.constant 0 : i32
    return %arg2, %arg1 : i32, i32
  }
  func.func @transform_2(%arg0: i32, %arg1: i32, %arg2: i32) -> (i32, i32) {
    %c0_i32 = arith.constant 0 : i32
    %c0_i32_0 = arith.constant 0 : i32
    return %c0_i32, %arg1 : i32, i32
  }
  func.func @transform_3(%arg0: i32, %arg1: i32, %arg2: i32) -> (i32, i32) {
    %c0_i32 = arith.constant 0 : i32
    return %arg0, %arg1 : i32, i32
  }
}

</mosaic_0001>

<llo_original>
// kernel: tpu_custom_call.1
$region0: #{tpu_custom_call.1}
  #allocation0 [shape = 'u32[]', space=smem, size = 0x4, offset = 0x4, fixed_abs, tag = 'smem constant byte address 0x4 - core index']
  #allocation1 [shape = 'u32[144,128]{1,0:T(1,128)}', space=vmem, size = 0x12000, scoped, tag = 'internal scratch']
  %s0 = inlined_call_operand.hbm [shape: bf16[16,32], index: 0, kind: input, shape index: {}]
  %s1 = inlined_call_operand.hbm [shape: bf16[32,32], index: 1, kind: input, shape index: {}]
  %s2 = inlined_call_operand.vmem [shape: f32[1,32], index: 2, kind: input, shape index: {}]
  %s3 = inlined_call_operand.hbm [shape: f32[16,32], index: 3, kind: output, shape index: {}]
  %s4 = sld [smem:[#allocation0]]
  $region53: #{tpu_custom_call.1} parent=0
    _
  %s6 = ssub.s32 1, %s4
  %s7 = scalar_select 0, %s6, %s4
  $region1: #{tpu_custom_call.1} parent=0
    #allocation2 [shape = 'u8[4096]{0}', space=vmem, size = 0x1000, scoped, tag = 'input window, operand 0']
    #allocation3 [shape = 's32[2]{0}', space=sflag, size = 0x8, scoped, tag = 'scoped memory for tpu_custom_call.1']
    #allocation4 [shape = 's32[2]{0}', space=sflag, size = 0x8, scoped, tag = 'scoped memory for tpu_custom_call.1']
    #allocation5 [shape = 'u8[8192]{0}', space=vmem, size = 0x2000, scoped, tag = 'input window, operand 1, single buffered']
    #allocation6 [shape = 's32[1]{0}', space=sflag, size = 0x4, scoped, tag = 'scoped memory for tpu_custom_call.1']
    #allocation7 [shape = 'u8[8192]{0}', space=vmem, size = 0x2000, scoped, tag = 'output window, operand 0']
    %8 = vsyncpa [#allocation3], 0
    %s9 = scalar_lea.sflag [#allocation3], 1
    %10 = vsyncpa %s9, 0
    %11 = vsyncpa [#allocation6], 0
    %12 = vsyncpa [#allocation4], 0
    %s13 = scalar_lea.sflag [#allocation4], 1
    %14 = vsyncpa %s13, 0
    loop: start=0, step=1, limit=4
    $region2: #{tpu_custom_call.1} parent=1 // loop_pre_header
      _
    $region3: #{tpu_custom_call.1} parent=1 // loop_header
      %s16 = sphi 0, %s20
      %p17 = scmp.ge.s32.totalorder %s16, 4
      %s23 = sphi 0, %s42
      %s24 = sphi 0, %s38
      %s25 = sphi 0, %s34
      %s26 = sphi 0, %s23
      %s27 = sphi 0, %s24
      %s28 = sphi 0, %s25
      %s29 = sphi 0, %s26
      %s30 = sphi 0, %s27
      %s31 = sphi 0, %s28
      %s47 = sphi 0, %s49
      %s50 = sphi 0, %s47
      %s51 = sphi 0, %s50
      %s67 = sphi 0, %s51
      %s75 = sphi 0, %s77
      %s78 = sphi 0, %s75
      %s79 = sphi 0, %s78
      %s95 = sphi 0, %s79
      %s101 = sphi 0, %s103
      %s104 = sphi 0, %s101
      %s105 = sphi 0, %s104
      %s121 = sphi 0, %s105
      %s129 = sphi 0, %s131
      %s132 = sphi 0, %s129
      %s133 = sphi 0, %s132
      %s149 = sphi 0, %s133
    $region4: #{tpu_custom_call.1} parent=1 // loop_header_branch
      %19 = sbr.rel (%p17) target = $region8
    $region5: #{tpu_custom_call.1} parent=1 // loop_body
      %s21 = ssub.s32 %s16, 1
      %s22 = ssub.s32 %s16, 2
      %s32 = sadd.s32 1, %s25
      %p33 = scmp.ge.s32.totalorder %s32, 1
      %s34 = scalar_select %p33, 0, %s32
      %s35 = sadd.s32 1, %s24
      %s36 = scalar_select %p33, %s35, %s24
      %p37 = scmp.ge.s32.totalorder %s36, 1
      %s38 = scalar_select %p37, 0, %s36
      %s39 = sadd.s32 1, %s23
      %s40 = scalar_select %p37, %s39, %s23
      %p41 = scmp.ge.s32.totalorder %s40, 2
      %s42 = scalar_select %p41, 0, %s40
      %s43 = ssub.s32 %s23, %s42
      %s44 = ssub.s32 %s25, %s34
      %s45 = sor.u32 %s43, %s44
      %p46 = scmp.eq.s32.totalorder %s45, 0
      %s48 = sadd.s32 %s47, 1
      %s49 = scalar_select %p46, %s47, %s48
      %p52 = pneg %p46
      %p53 = scmp.eq.s32.totalorder %s16, 1
      %p54 = por %p52, %p53
      %p55 = scmp.ne.s32.totalorder %s47, %s50
      %p56 = scmp.eq.s32.totalorder %s16, 0
      %p57 = por %p55, %p56
      %p58 = scmp.ne.s32.totalorder %s47, %s50
      %p59 = scmp.eq.s32.totalorder %s21, 1
      %p60 = por %p58, %p59
      %p61 = scmp.ne.s32.totalorder %s50, %s51
      %p62 = scmp.eq.s32.totalorder %s21, 0
      %p63 = por %p61, %p62
      %p64 = scmp.ne.s32.totalorder %s50, %s51
      %p65 = scmp.eq.s32.totalorder %s22, 1
      %p66 = por %p64, %p65
      %p68 = scmp.ne.s32.totalorder %s51, %s67
      %p69 = scmp.eq.s32.totalorder %s22, 0
      %p70 = por %p68, %p69
      %s71 = ssub.s32 %s25, %s34
      %s72 = ssub.s32 %s24, %s38
      %s73 = sor.u32 %s71, %s72
      %p74 = scmp.eq.s32.totalorder %s73, 0
      %s76 = sadd.s32 %s75, 1
      %s77 = scalar_select %p74, %s75, %s76
      %p80 = pneg %p74
      %p81 = scmp.eq.s32.totalorder %s16, 1
      %p82 = por %p80, %p81
      %p83 = scmp.ne.s32.totalorder %s75, %s78
      %p84 = scmp.eq.s32.totalorder %s16, 0
      %p85 = por %p83, %p84
      %p86 = scmp.ne.s32.totalorder %s75, %s78
      %p87 = scmp.eq.s32.totalorder %s21, 1
      %p88 = por %p86, %p87
      %p89 = scmp.ne.s32.totalorder %s78, %s79
      %p90 = scmp.eq.s32.totalorder %s21, 0
      %p91 = por %p89, %p90
      %p92 = scmp.ne.s32.totalorder %s78, %s79
      %p93 = scmp.eq.s32.totalorder %s22, 1
      %p94 = por %p92, %p93
      %p96 = scmp.ne.s32.totalorder %s79, %s95
      %p97 = scmp.eq.s32.totalorder %s22, 0
      %p98 = por %p96, %p97
      %s99 = ssub.s32 %s24, %s38
      %p100 = scmp.eq.s32.totalorder %s99, 0
      %s102 = sadd.s32 %s101, 1
      %s103 = scalar_select %p100, %s101, %s102
      %p106 = pneg %p100
      %p107 = scmp.eq.s32.totalorder %s16, 1
      %p108 = por %p106, %p107
      %p109 = scmp.ne.s32.totalorder %s101, %s104
      %p110 = scmp.eq.s32.totalorder %s16, 0
      %p111 = por %p109, %p110
      %p112 = scmp.ne.s32.totalorder %s101, %s104
      %p113 = scmp.eq.s32.totalorder %s21, 1
      %p114 = por %p112, %p113
      %p115 = scmp.ne.s32.totalorder %s104, %s105
      %p116 = scmp.eq.s32.totalorder %s21, 0
      %p117 = por %p115, %p116
      %p118 = scmp.ne.s32.totalorder %s104, %s105
      %p119 = scmp.eq.s32.totalorder %s22, 1
      %p120 = por %p118, %p119
      %p122 = scmp.ne.s32.totalorder %s105, %s121
      %p123 = scmp.eq.s32.totalorder %s22, 0
      %p124 = por %p122, %p123
      %s125 = ssub.s32 %s23, %s42
      %s126 = ssub.s32 %s24, %s38
      %s127 = sor.u32 %s125, %s126
      %p128 = scmp.eq.s32.totalorder %s127, 0
      %s130 = sadd.s32 %s129, 1
      %s131 = scalar_select %p128, %s129, %s130
      %p134 = pneg %p128
      %p135 = scmp.eq.s32.totalorder %s16, 1
      %p136 = por %p134, %p135
      %p137 = scmp.ne.s32.totalorder %s129, %s132
      %p138 = scmp.eq.s32.totalorder %s16, 0
      %p139 = por %p137, %p138
      %p140 = scmp.ne.s32.totalorder %s129, %s132
      %p141 = scmp.eq.s32.totalorder %s21, 1
      %p142 = por %p140, %p141
      %p143 = scmp.ne.s32.totalorder %s132, %s133
      %p144 = scmp.eq.s32.totalorder %s21, 0
      %p145 = por %p143, %p144
      %p146 = scmp.ne.s32.totalorder %s132, %s133
      %p147 = scmp.eq.s32.totalorder %s22, 1
      %p148 = por %p146, %p147
      %p150 = scmp.ne.s32.totalorder %s133, %s149
      %p151 = scmp.eq.s32.totalorder %s22, 0
      %p152 = por %p150, %p151
      %p153 = scmp.le.s32.totalorder 1, %s16
      %p154 = scmp.lt.s32.totalorder %s16, 3
      %p155 = pnand %p153, %p154
      %p156 = pneg %p155
      // Predicated region
      $region9: #{tpu_custom_call.1} parent=5 // pred_check
        _
      $region10: #{tpu_custom_call.1} parent=5 // pred_check_branch
        %158 = sbr.rel (%p155) target = $region12
      $region11: #{tpu_custom_call.1} parent=5 // pred_region
        %s159 = ssub.s32 %s16, 1
        // Predicated region
        $region13: #{tpu_custom_call.1} parent=11 // pred_check
          %p160 = pneg %p91
        $region14: #{tpu_custom_call.1} parent=11 // pred_check_branch
          %162 = sbr.rel (%p160) target = $region16
        $region15: #{tpu_custom_call.1} parent=11 // pred_region
          %s163 = smul.u32 4, %s28
          %s165 = ssub.s32 256, 256
          %166 = vsyncadd [#allocation6], %s165
          %s167 = sadd.s32 %s27, %s163
          %s168 = smul.addr %s167, 64
          %s169 = scalar_lea.hbm %s1, %s168
          %s170 = sshll.u32 [#allocation5], 4
          %s171 = int_to_ptr.vmem [resolvable:$true] %s170
          %176 = dma.hbm_to_vmem [thread:$0]  %s169, 256, %s171, [#allocation6], 64, 64, 4
        $region16: #{tpu_custom_call.1} parent=11 // pred_fallthru
          _
        // Predicated region
        $region17: #{tpu_custom_call.1} parent=11 // pred_check
          %p177 = pneg %p117
        $region18: #{tpu_custom_call.1} parent=11 // pred_check_branch
          %179 = sbr.rel (%p177) target = $region20
        $region19: #{tpu_custom_call.1} parent=11 // pred_region
          %p180 = scmp.lt.s32.totalorder %s27, 0
          %s181 = scalar_select %p180, %s27, 0
          %s182 = scalar_lea.vmem %s2, %s181
        $region20: #{tpu_custom_call.1} parent=11 // pred_fallthru
          _
      $region12: #{tpu_custom_call.1} parent=5 // pred_fallthru
        _
      %p183 = scmp.lt.s32.totalorder %s16, 2
      // Predicated region
      $region21: #{tpu_custom_call.1} parent=5 // pred_check
        %p184 = pneg %p183
      $region22: #{tpu_custom_call.1} parent=5 // pred_check_branch
        %186 = sbr.rel (%p184) target = $region24
      $region23: #{tpu_custom_call.1} parent=5 // pred_region
        // Predicated region
        $region25: #{tpu_custom_call.1} parent=23 // pred_check
          %p187 = pneg %p57
        $region26: #{tpu_custom_call.1} parent=23 // pred_check_branch
          %189 = sbr.rel (%p187) target = $region28
        $region27: #{tpu_custom_call.1} parent=23 // pred_region
          %s190 = sand.u32 %s47, 1
          %s191 = scalar_lea.sflag [#allocation3], %s190
          %s192 = sand.u32 %s47, 1
          %s193 = smul.addr %s192, 4
          %s194 = scalar_lea.vmem [#allocation2], %s193
          %s196 = ssub.s32 64, 64
          %197 = vsyncadd %s191, %s196
          %s198 = sadd.s32 %s25, %s23
          %s199 = smul.addr %s198, 64
          %s200 = scalar_lea.hbm %s0, %s199
          %s202 = sshll.u32 %s194, 4
          %s203 = int_to_ptr.vmem [resolvable:$true] %s202
          %205 = dma.hbm_to_vmem [thread:$0]  %s200, 64, %s203, %s191
        $region28: #{tpu_custom_call.1} parent=23 // pred_fallthru
          _
      $region24: #{tpu_custom_call.1} parent=5 // pred_fallthru
        _
      %p206 = scmp.le.s32.totalorder 1, %s16
      %p207 = scmp.lt.s32.totalorder %s16, 3
      %p208 = pnand %p206, %p207
      %p209 = pneg %p208
      // Predicated region
      $region29: #{tpu_custom_call.1} parent=5 // pred_check
        _
      $region30: #{tpu_custom_call.1} parent=5 // pred_check_branch
        %211 = sbr.rel (%p208) target = $region32
      $region31: #{tpu_custom_call.1} parent=5 // pred_region
        %s212 = ssub.s32 %s16, 1
        %s213 = sand.u32 %s50, 1
        %s214 = scalar_lea.sflag [#allocation3], %s213
        %s215 = sand.u32 %s50, 1
        %s216 = smul.addr %s215, 4
        %s217 = scalar_lea.vmem [#allocation2], %s216
        // Predicated region
        $region33: #{tpu_custom_call.1} parent=31 // pred_check
          %p218 = pneg %p63
        $region34: #{tpu_custom_call.1} parent=31 // pred_check_branch
          %220 = sbr.rel (%p218) target = $region36
        $region35: #{tpu_custom_call.1} parent=31 // pred_region
          %221 = dma.done %s214, 64
        $region36: #{tpu_custom_call.1} parent=31 // pred_fallthru
          _
        // Predicated region
        $region37: #{tpu_custom_call.1} parent=31 // pred_check
          %p222 = pneg %p91
        $region38: #{tpu_custom_call.1} parent=31 // pred_check_branch
          %224 = sbr.rel (%p222) target = $region40
        $region39: #{tpu_custom_call.1} parent=31 // pred_region
          %225 = dma.done [#allocation6], 256
        $region40: #{tpu_custom_call.1} parent=31 // pred_fallthru
          _
        %s226 = sand.u32 %s50, 1
        %s227 = scalar_lea.sflag [#allocation3], %s226
        %s228 = sand.u32 %s50, 1
        %s229 = smul.addr %s228, 4
        %s230 = scalar_lea.vmem [#allocation2], %s229
        %p231 = pneg %p63
        %p232 = pneg %p60
        %p233 = pneg %p91
        %p234 = pneg %p88
        %p235 = scmp.lt.s32.totalorder %s27, 0
        %s236 = scalar_select %p235, %s27, 0
        %s237 = scalar_lea.vmem %s2, %s236
        %p238 = pneg %p117
        %p239 = pneg %p114
        %p240 = pneg %p145
        %p241 = pneg %p142
        %s242 = sand.u32 %s132, 1
        %s243 = scalar_lea.sflag [#allocation4], %s242
        %s244 = sand.u32 %s132, 1
        %s245 = smul.addr %s244, 8
        %s246 = scalar_lea.vmem [#allocation7], %s245
        %s247 = smul.u32 4, %s28
        %p248 = scmp.lt.s32.totalorder %s27, 0
        %s249 = scalar_select %p248, %s27, 0
        %s250 = scalar_lea.vmem %s2, %s249
        %v252 = vld [vmem:[%s217] sm:$0xf]
        %v253 = vld [vmem:[#allocation5] sm:$0xf]
        %v254 = vld [vmem:[#allocation5 + $0x4] sm:$0xf]
        %v255 = vld [vmem:[#allocation5 + $0x8] sm:$0xf]
        %v256 = vld [vmem:[#allocation5 + $0xc] sm:$0xf]
        %v257 = vld [vmem:[%s250] sm:$0x1]
        %v259 = vlaneseq
        %v260 = vshrl.u32 %v259, 7
        %v261 = vsub.s32 0, %v260
        %v262 = vrot.slane %v257, %v261
        %v268 = vunpack.c.l.b16 %v253
        %v269 = vunpack.c.l.b16 %v254
        %v270 = vunpack.c.l.b16 %v255
        %v271 = vunpack.c.l.b16 %v256
        %v272 = vpack.c.b16 %v269, %v268
        %v273 = vpack.c.b16 %v271, %v270
        %vm276 = vcmask 261120
        %v278 = vsel %vm276, %v252, 0
        %280 = vmatprep.subr.bf16.mxu0 0
        %281 = vmatpush1.bf16.msra.mxu0 %v272
        %282 = vmatprep.subr.bf16.mxu0 0
        %283 = vmatpush1.bf16.msra.mxu0 %v273
        %284 = vmatprep.subr.bf16.mxu0 0
        %285 = vmatpush1.bf16.msra.mxu0 0
        %286 = vmatprep.subr.bf16.mxu0 0
        %287 = vmatpush1.bf16.msra.mxu0 0
        %288 = vmatprep.subr.bf16.mxu0 0
        %289 = vmatpush1.bf16.msra.mxu0 0
        %290 = vmatprep.subr.bf16.mxu0 0
        %291 = vmatpush1.bf16.msra.mxu0 0
        %292 = vmatprep.subr.bf16.mxu0 0
        %293 = vmatpush1.bf16.msra.mxu0 0
        %294 = vmatprep.subr.bf16.mxu0 0
        %295 = vmatpush1.bf16.msra.mxu0 0
        %296 = vmatprep.subr.bf16.mxu0 0
        %297 = vmatpush1.bf16.msra.mxu0 0
        %298 = vmatprep.subr.bf16.mxu0 0
        %299 = vmatpush1.bf16.msra.mxu0 0
        %300 = vmatprep.subr.bf16.mxu0 0
        %301 = vmatpush1.bf16.msra.mxu0 0
        %302 = vmatprep.subr.bf16.mxu0 0
        %303 = vmatpush1.bf16.msra.mxu0 0
        %304 = vmatprep.subr.bf16.mxu0 0
        %305 = vmatpush1.bf16.msra.mxu0 0
        %306 = vmatprep.subr.bf16.mxu0 0
        %307 = vmatpush1.bf16.msra.mxu0 0
        %308 = vmatprep.subr.bf16.mxu0 0
        %309 = vmatpush1.bf16.msra.mxu0 0
        %310 = vmatprep.subr.bf16.mxu0 0
        %311 = vmatpush1.bf16.msra.mxu0 0
        %312 = vmatprep.mubr.bf16.mxu0 0
        %313 = vmatmul.mubr.bf16.gmra.mrb[0].mxu0 %v278
        %v314 = vpop.f32.mrb[0].mxu0
        %v315 = vadd.f32 %v262, %v314
        %v316 = vpop.f32.mrb[0].mxu0
        %v317 = vpop.f32.mrb[0].mxu0
        %v318 = vpop.f32.mrb[0].mxu0
        %319 = vdwg.mxu0
        %320 = vst.msk [vmem:[%s246] sm:$0xff] %vm276, %v315
        %s321 = sand.u32 %s132, 1
        %s322 = scalar_lea.sflag [#allocation4], %s321
        %s323 = sand.u32 %s132, 1
        %s324 = smul.addr %s323, 8
        %s325 = scalar_lea.vmem [#allocation7], %s324
        // Predicated region
        $region41: #{tpu_custom_call.1} parent=31 // pred_check
          %p326 = pneg %p142
        $region42: #{tpu_custom_call.1} parent=31 // pred_check_branch
          %328 = sbr.rel (%p326) target = $region44
        $region43: #{tpu_custom_call.1} parent=31 // pred_region
          %s330 = ssub.s32 128, 128
          %331 = vsyncadd %s322, %s330
          %s332 = sadd.s32 %s27, %s26
          %s333 = smul.addr %s332, 128
          %s334 = scalar_lea.hbm %s3, %s333
          %s336 = sshll.u32 %s325, 4
          %s337 = int_to_ptr.vmem [resolvable:$true] %s336
          %339 = dma.vmem_to_hbm [thread:$0]  %s337, 128, %s334, %s322
        $region44: #{tpu_custom_call.1} parent=31 // pred_fallthru
          _
      $region32: #{tpu_custom_call.1} parent=5 // pred_fallthru
        _
      %p340 = scmp.le.s32.totalorder 2, %s16
      // Predicated region
      $region45: #{tpu_custom_call.1} parent=5 // pred_check
        %p341 = pneg %p340
      $region46: #{tpu_custom_call.1} parent=5 // pred_check_branch
        %343 = sbr.rel (%p341) target = $region48
      $region47: #{tpu_custom_call.1} parent=5 // pred_region
        %s344 = ssub.s32 %s16, 2
        // Predicated region
        $region49: #{tpu_custom_call.1} parent=47 // pred_check
          %p345 = pneg %p148
        $region50: #{tpu_custom_call.1} parent=47 // pred_check_branch
          %347 = sbr.rel (%p345) target = $region52
        $region51: #{tpu_custom_call.1} parent=47 // pred_region
          %s348 = sand.u32 %s133, 1
          %s349 = scalar_lea.sflag [#allocation4], %s348
          %s350 = sand.u32 %s133, 1
          %s351 = smul.addr %s350, 8
          %s352 = scalar_lea.vmem [#allocation7], %s351
          %353 = dma.done %s349, 128
        $region52: #{tpu_custom_call.1} parent=47 // pred_fallthru
          _
      $region48: #{tpu_custom_call.1} parent=5 // pred_fallthru
        _
    $region6: #{tpu_custom_call.1} parent=1 // loop_footer
      %s20 = sadd.s32 1, %s16
    $region7: #{tpu_custom_call.1} parent=1 // loop_footer_branch
      %15 = sbr.rel target = $region3
    $region8: #{tpu_custom_call.1} parent=1 // loop_exit
      _
    %354 = vsyncpa [#allocation3], 1
    %s355 = scalar_lea.sflag [#allocation3], 1
    %356 = vsyncpa %s355, 1
    %357 = vsyncpa [#allocation6], 1
    %358 = vsyncpa [#allocation4], 1
    %s359 = scalar_lea.sflag [#allocation4], 1
    %360 = vsyncpa %s359, 1

</llo_original>
